<compile_context>
chip_gen: v7x
topology: tpu7x:2x2x1
jax: 0.10.0
libtpu: 0.0.40
codegen_flags: <defaults>
</compile_context>

<pallas_src>
from functools import partial

import jax
import jax.numpy as jnp
import numpy as np
from jax.experimental import pallas as pl
from jax.experimental.pallas import tpu as pltpu


def _resblock_kernel(x_ref, w1_ref, w2_ref, b1_ref, b2_ref, mask_ref,
                     o_ref, ypad_ref, *, H, W):
    """One batch element, everything in flat padded-spatial (lane) layout.

    x_ref   : (Cin, NPE)  bf16  zero-padded input, flattened (H+2)*(W+2)=NP spatial
                                on lanes, extended by P=W+3 zero lanes on each side
    w1_ref  : (Cout, 9*Cin)  bf16  conv1 weights * bn1 scale, columns (k*Cin + ci)
    w2_ref  : (Cout, 9*Cout) bf16  conv2 weights * bn2 scale
    b1/b2   : (Cout, 1)  f32   folded BN shift (conv bias included)
    mask_ref: (1, NP)    f32   1.0 at interior padded positions, 0.0 on the border
    o_ref   : (Cout, NP) f32   output in padded-flat coords (border lanes are junk,
                                sliced off by the wrapper)
    ypad_ref: (Cout, NPE) f32  scratch: halo-extended conv1 output for conv2 taps
    """
    Wp = W + 2
    NP = (H + 2) * Wp          # padded spatial, flattened onto lanes
    P = W + 3                  # halo so every 3x3 tap is a static lane slice
    Cout = o_ref.shape[0]
    # tap k=(dy,dx): reads flat position q + (dy-1)*Wp + (dx-1) (valid for interior q)
    offs = [(dy - 1) * Wp + (dx - 1) for dy in range(3) for dx in range(3)]

    # Zero only the halo strips of the conv2 scratch, once. The interior is fully
    # overwritten every grid step and the strips are never written afterwards.
    @pl.when(pl.program_id(0) == 0)
    def _():
        ypad_ref[:, 0:P] = jnp.zeros((Cout, P), jnp.float32)
        ypad_ref[:, P + NP:P + NP + P] = jnp.zeros((Cout, P), jnp.float32)

    # ---- conv1: im2col via 9 static lane-shifted slices -> one K=9*Cin MXU matmul ----
    col1 = jnp.concatenate(
        [x_ref[:, P + o:P + o + NP].astype(jnp.float32) for o in offs], axis=0)
    acc1 = jnp.dot(w1_ref[...], col1.astype(jnp.bfloat16),
                   preferred_element_type=jnp.float32)            # (Cout, NP) f32

    # bn1 (scale folded into w1) + relu; mask zeros the padded border so conv2's
    # halo reads zeros (border lanes of acc1 are junk from the shifted slices).
    y = jnp.maximum(acc1 + b1_ref[...], 0.0) * mask_ref[...]
    # dropout(p=0.3): eval-mode identity
    # TODO(synk): training-mode dropout (random mask + 1/(1-p) scaling) not implemented.

    # single lane-dense store of the interior; halo strips already zero
    ypad_ref[:, P:P + NP] = y

    # ---- conv2: same im2col trick on the halo-extended intermediate ----
    col2 = jnp.concatenate(
        [ypad_ref[:, P + o:P + o + NP] for o in offs], axis=0)
    acc2 = jnp.dot(w2_ref[...], col2.astype(jnp.bfloat16),
                   preferred_element_type=jnp.float32)            # (Cout, NP) f32

    # bn2 (folded) + residual + relu; border lanes are junk and sliced off outside
    identity = x_ref[:, P:P + NP].astype(jnp.float32)             # Cin == Cout
    z = jnp.maximum(acc2 + b2_ref[...] + identity, 0.0)
    o_ref[...] = z.astype(o_ref.dtype)


def _fold_bn(w, bias, gamma, beta, mean, var, eps=1e-5):
    """Fold eval-mode BatchNorm into the conv: scale -> weights, bias/mean -> shift."""
    scale = gamma / jnp.sqrt(var + eps)                    # (O,)
    w_eff = w * scale[:, None, None, None]                 # (O, I, 3, 3)
    shift = (bias - mean) * scale + beta                   # (O,)
    return w_eff, shift


def resblock_forward(x_nchw, p):
    """ResBlock forward. x_nchw: (N, C, H, W) f32. Returns (N, C, H, W) f32."""
    N, Cin, H, W = x_nchw.shape
    Cout = p["w1"].shape[0]
    assert Cin == Cout, "stride=1 / downsample_identity=None path requires Cin == Cout"
    # TODO(synk): stride>1 + downsample_identity (arbitrary sub-module) path not implemented.

    Hp, Wp = H + 2, W + 2
    NP = Hp * Wp                 # flattened padded spatial (lanes)
    P = W + 3                    # halo lanes on each side
    NPE = NP + 2 * P

    # fold BN into conv weights / shifts; lay weights out as (Cout, 9*C) tap-major
    w1_eff, sh1 = _fold_bn(p["w1"], p["b1"], p["g1"], p["be1"], p["m1"], p["v1"])
    w2_eff, sh2 = _fold_bn(p["w2"], p["b2"], p["g2"], p["be2"], p["m2"], p["v2"])
    w1t = jnp.transpose(w1_eff, (0, 2, 3, 1)).reshape(Cout, 9 * Cin).astype(jnp.bfloat16)
    w2t = jnp.transpose(w2_eff, (0, 2, 3, 1)).reshape(Cout, 9 * Cout).astype(jnp.bfloat16)
    b1 = sh1.reshape(Cout, 1).astype(jnp.float32)
    b2 = sh2.reshape(Cout, 1).astype(jnp.float32)

    # NCHW -> zero-pad spatial by 1 -> flatten padded spatial onto lanes -> add a
    # P-lane zero halo on each side so every 3x3 tap is a static lane slice.
    # bf16 halves HBM->VMEM DMA bytes.
    xp = jnp.pad(x_nchw, ((0, 0), (0, 0), (1, 1), (1, 1))).reshape(N, Cin, NP)
    xe = jnp.pad(xp, ((0, 0), (0, 0), (P, P))).astype(jnp.bfloat16)       # (N, Cin, NPE)

    # interior mask over the flattened padded spatial axis (precomputed, tiny DMA)
    hq, wq = np.meshgrid(np.arange(Hp), np.arange(Wp), indexing="ij")
    interior = ((hq >= 1) & (hq <= H) & (wq >= 1) & (wq <= W)).reshape(1, NP)
    mask = jnp.asarray(interior, jnp.float32)

    # NOTE: per-step working set (x block bf16 + out block f32 + scratch + weights,
    # double-buffered) is only a few tens of KB here, far under the 32 MiB default
    # scoped VMEM on all generations; no vmem_limit_bytes override needed.
    out = pl.pallas_call(
        partial(_resblock_kernel, H=H, W=W),
        out_shape=jax.ShapeDtypeStruct((N, Cout, NP), jnp.float32),
        grid_spec=pltpu.PrefetchScalarGridSpec(
            num_scalar_prefetch=0,
            grid=(N,),
            in_specs=[
                pl.BlockSpec((None, Cin, NPE), lambda n: (n, 0, 0)),
                pl.BlockSpec((Cout, 9 * Cin), lambda n: (0, 0)),
                pl.BlockSpec((Cout, 9 * Cout), lambda n: (0, 0)),
                pl.BlockSpec((Cout, 1), lambda n: (0, 0)),
                pl.BlockSpec((Cout, 1), lambda n: (0, 0)),
                pl.BlockSpec((1, NP), lambda n: (0, 0)),
            ],
            out_specs=pl.BlockSpec((None, Cout, NP), lambda n: (n, 0, 0)),
            scratch_shapes=[pltpu.VMEM((Cout, NPE), jnp.float32)],
        ),
        compiler_params=pltpu.CompilerParams(
            dimension_semantics=("parallel",),   # batch elements independent (v7x 2 TCs)
        ),
    )(xe, w1t, w2t, b1, b2, mask)

    # drop the padded border; layout is already NCHW-flat so no transpose anywhere
    return out.reshape(N, Cout, Hp, Wp)[:, :, 1:H + 1, 1:W + 1]


def _reference_forward(x, p, eps=1e-5, quantize=False):
    """Pure-JAX NCHW reference (eval-mode BN, eval-mode dropout).

    quantize=True rounds the matmul inputs to bf16 exactly like the kernel's MXU
    operands, so the comparison isolates layout/indexing correctness.
    """
    bf = (lambda a: a.astype(jnp.bfloat16).astype(jnp.float32)) if quantize else (lambda a: a)
    w1, sh1 = _fold_bn(p["w1"], p["b1"], p["g1"], p["be1"], p["m1"], p["v1"], eps)
    w2, sh2 = _fold_bn(p["w2"], p["b2"], p["g2"], p["be2"], p["m2"], p["v2"], eps)
    w1, w2, xq = bf(w1), bf(w2), bf(x)
    dn = jax.lax.conv_dimension_numbers(x.shape, w1.shape, ("NCHW", "OIHW", "NCHW"))

    def conv(a, w):
        return jax.lax.conv_general_dilated(
            a, w, (1, 1), ((1, 1), (1, 1)), dimension_numbers=dn,
            precision=jax.lax.Precision.HIGHEST)

    y = jnp.maximum(conv(xq, w1) + sh1[None, :, None, None], 0.0)
    z = conv(bf(y), w2) + sh2[None, :, None, None] + xq
    return jnp.maximum(z, 0.0)


if __name__ == "__main__":
    N, C, H, W = 2, 8, 16, 16   # in_channels == out_channels, stride=1, downsample=None

    key = jax.random.PRNGKey(0)
    ks = jax.random.split(key, 13)
    p = dict(
        w1=0.1 * jax.random.normal(ks[0], (C, C, 3, 3), jnp.float32),
        b1=0.1 * jax.random.normal(ks[1], (C,), jnp.float32),
        g1=1.0 + 0.1 * jax.random.normal(ks[2], (C,), jnp.float32),
        be1=0.1 * jax.random.normal(ks[3], (C,), jnp.float32),
        m1=0.1 * jax.random.normal(ks[4], (C,), jnp.float32),
        v1=jax.random.uniform(ks[5], (C,), jnp.float32, 0.5, 1.5),
        w2=0.1 * jax.random.normal(ks[6], (C, C, 3, 3), jnp.float32),
        b2=0.1 * jax.random.normal(ks[7], (C,), jnp.float32),
        g2=1.0 + 0.1 * jax.random.normal(ks[8], (C,), jnp.float32),
        be2=0.1 * jax.random.normal(ks[9], (C,), jnp.float32),
        m2=0.1 * jax.random.normal(ks[10], (C,), jnp.float32),
        v2=jax.random.uniform(ks[11], (C,), jnp.float32, 0.5, 1.5),
    )
    x = jax.random.normal(ks[12], (N, C, H, W), jnp.float32)

    out = jax.block_until_ready(resblock_forward(x, p))
    assert out.shape == (N, C, H, W)

    # tight check: reference using the same bf16-rounded matmul inputs (layout/indexing)
    ref_q = _reference_forward(x, p, quantize=True)
    np.testing.assert_allclose(np.asarray(out), np.asarray(ref_q), rtol=1e-2, atol=1e-2)
    # loose check: full-precision module semantics (tolerance covers bf16 matmul inputs)
    ref = _reference_forward(x, p, quantize=False)
    np.testing.assert_allclose(np.asarray(out), np.asarray(ref), rtol=5e-2, atol=5e-2)

    print("KERNEL_OK")
</pallas_src>

<mosaic_0001>
module attributes {stable_mosaic.version = 11 : i64} {
  func.func @_resblock_kernel(%arg0: i32, %arg1: memref<1x8x362xbf16, #tpu.memory_space<vmem>>, %arg2: memref<8x72xbf16, #tpu.memory_space<vmem>>, %arg3: memref<8x72xbf16, #tpu.memory_space<vmem>>, %arg4: memref<8x1xf32, #tpu.memory_space<vmem>>, %arg5: memref<8x1xf32, #tpu.memory_space<vmem>>, %arg6: memref<1x324xf32, #tpu.memory_space<vmem>>, %arg7: memref<1x8x324xf32, #tpu.memory_space<vmem>>, %arg8: memref<8x362xf32, #tpu.memory_space<vmem>>) attributes {dimension_semantics = [#tpu.dimension_semantics<parallel>], iteration_bounds = array<i64: 2>, scalar_prefetch = 0 : i64, scratch_operands = 1 : i64, tpu.core_type = #tpu.core_type<tc>, window_params = [{transform_indices = @transform_0, window_bounds = array<i64: 1, 8, 362>}, {pipeline_mode = #tpu.pipeline_mode<synchronous>, transform_indices = @transform_1, window_bounds = array<i64: 8, 72>}, {pipeline_mode = #tpu.pipeline_mode<synchronous>, transform_indices = @transform_2, window_bounds = array<i64: 8, 72>}, {pipeline_mode = #tpu.pipeline_mode<synchronous>, transform_indices = @transform_3, window_bounds = array<i64: 8, 1>}, {pipeline_mode = #tpu.pipeline_mode<synchronous>, transform_indices = @transform_4, window_bounds = array<i64: 8, 1>}, {pipeline_mode = #tpu.pipeline_mode<synchronous>, transform_indices = @transform_5, window_bounds = array<i64: 1, 324>}, {transform_indices = @transform_6, window_bounds = array<i64: 1, 8, 324>}]} {
    %c0_i32 = arith.constant 0 : i32
    %0 = arith.cmpi eq, %arg0, %c0_i32 : i32
    %1 = arith.extui %0 : i1 to i32
    %c0_i32_0 = arith.constant 0 : i32
    %2 = arith.cmpi ne, %1, %c0_i32_0 : i32
    scf.if %2 {
      %cst_58 = arith.constant 0.000000e+00 : f32
      %68 = vector.broadcast %cst_58 : f32 to vector<8x19xf32>
      %c0_59 = arith.constant 0 : index
      %c0_60 = arith.constant 0 : index
      %69 = vector.load %arg8[%c0_59, %c0_60] : memref<8x362xf32, #tpu.memory_space<vmem>>, vector<8x19xf32>
      tpu.vector_store %arg8[%c0_59, %c0_60], %68 {strides = array<i32>} : memref<8x362xf32, #tpu.memory_space<vmem>>, vector<8x19xf32>,
      %cst_61 = arith.constant 0.000000e+00 : f32
      %70 = vector.broadcast %cst_61 : f32 to vector<8x19xf32>
      %c0_62 = arith.constant 0 : index
      %c343 = arith.constant 343 : index
      %71 = vector.load %arg8[%c0_62, %c343] : memref<8x362xf32, #tpu.memory_space<vmem>>, vector<8x19xf32>
      tpu.vector_store %arg8[%c0_62, %c343], %70 {strides = array<i32>} : memref<8x362xf32, #tpu.memory_space<vmem>>, vector<8x19xf32>,
    } else {
    }
    %c0 = arith.constant 0 : index
    %c0_1 = arith.constant 0 : index
    %c0_2 = arith.constant 0 : index
    %3 = vector.load %arg1[%c0, %c0_1, %c0_2] : memref<1x8x362xbf16, #tpu.memory_space<vmem>>, vector<1x8x324xbf16>
    %4 = vector.shape_cast %3 : vector<1x8x324xbf16> to vector<8x324xbf16>
    %5 = arith.extf %4 : vector<8x324xbf16> to vector<8x324xf32>
    %c0_3 = arith.constant 0 : index
    %c0_4 = arith.constant 0 : index
    %c1 = arith.constant 1 : index
    %6 = vector.load %arg1[%c0_3, %c0_4, %c1] : memref<1x8x362xbf16, #tpu.memory_space<vmem>>, vector<1x8x324xbf16>
    %7 = vector.shape_cast %6 : vector<1x8x324xbf16> to vector<8x324xbf16>
    %8 = arith.extf %7 : vector<8x324xbf16> to vector<8x324xf32>
    %c0_5 = arith.constant 0 : index
    %c0_6 = arith.constant 0 : index
    %c2 = arith.constant 2 : index
    %9 = vector.load %arg1[%c0_5, %c0_6, %c2] : memref<1x8x362xbf16, #tpu.memory_space<vmem>>, vector<1x8x324xbf16>
    %10 = vector.shape_cast %9 : vector<1x8x324xbf16> to vector<8x324xbf16>
    %11 = arith.extf %10 : vector<8x324xbf16> to vector<8x324xf32>
    %c0_7 = arith.constant 0 : index
    %c0_8 = arith.constant 0 : index
    %c18 = arith.constant 18 : index
    %12 = vector.load %arg1[%c0_7, %c0_8, %c18] : memref<1x8x362xbf16, #tpu.memory_space<vmem>>, vector<1x8x324xbf16>
    %13 = vector.shape_cast %12 : vector<1x8x324xbf16> to vector<8x324xbf16>
    %14 = arith.extf %13 : vector<8x324xbf16> to vector<8x324xf32>
    %c0_9 = arith.constant 0 : index
    %c0_10 = arith.constant 0 : index
    %c19 = arith.constant 19 : index
    %15 = vector.load %arg1[%c0_9, %c0_10, %c19] : memref<1x8x362xbf16, #tpu.memory_space<vmem>>, vector<1x8x324xbf16>
    %16 = vector.shape_cast %15 : vector<1x8x324xbf16> to vector<8x324xbf16>
    %17 = arith.extf %16 : vector<8x324xbf16> to vector<8x324xf32>
    %c0_11 = arith.constant 0 : index
    %c0_12 = arith.constant 0 : index
    %c20 = arith.constant 20 : index
    %18 = vector.load %arg1[%c0_11, %c0_12, %c20] : memref<1x8x362xbf16, #tpu.memory_space<vmem>>, vector<1x8x324xbf16>
    %19 = vector.shape_cast %18 : vector<1x8x324xbf16> to vector<8x324xbf16>
    %20 = arith.extf %19 : vector<8x324xbf16> to vector<8x324xf32>
    %c0_13 = arith.constant 0 : index
    %c0_14 = arith.constant 0 : index
    %c36 = arith.constant 36 : index
    %21 = vector.load %arg1[%c0_13, %c0_14, %c36] : memref<1x8x362xbf16, #tpu.memory_space<vmem>>, vector<1x8x324xbf16>
    %22 = vector.shape_cast %21 : vector<1x8x324xbf16> to vector<8x324xbf16>
    %23 = arith.extf %22 : vector<8x324xbf16> to vector<8x324xf32>
    %c0_15 = arith.constant 0 : index
    %c0_16 = arith.constant 0 : index
    %c37 = arith.constant 37 : index
    %24 = vector.load %arg1[%c0_15, %c0_16, %c37] : memref<1x8x362xbf16, #tpu.memory_space<vmem>>, vector<1x8x324xbf16>
    %25 = vector.shape_cast %24 : vector<1x8x324xbf16> to vector<8x324xbf16>
    %26 = arith.extf %25 : vector<8x324xbf16> to vector<8x324xf32>
    %c0_17 = arith.constant 0 : index
    %c0_18 = arith.constant 0 : index
    %c38 = arith.constant 38 : index
    %27 = vector.load %arg1[%c0_17, %c0_18, %c38] : memref<1x8x362xbf16, #tpu.memory_space<vmem>>, vector<1x8x324xbf16>
    %28 = vector.shape_cast %27 : vector<1x8x324xbf16> to vector<8x324xbf16>
    %29 = arith.extf %28 : vector<8x324xbf16> to vector<8x324xf32>
    %30 = tpu.concatenate %5, %8, %11, %14, %17, %20, %23, %26, %29 in 0 : vector<8x324xf32>, vector<8x324xf32>, vector<8x324xf32>, vector<8x324xf32>, vector<8x324xf32>, vector<8x324xf32>, vector<8x324xf32>, vector<8x324xf32>, vector<8x324xf32> -> vector<72x324xf32>
    %c0_19 = arith.constant 0 : index
    %c0_20 = arith.constant 0 : index
    %31 = vector.load %arg2[%c0_19, %c0_20] : memref<8x72xbf16, #tpu.memory_space<vmem>>, vector<8x72xbf16>
    %32 = arith.truncf %30 : vector<72x324xf32> to vector<72x324xbf16>
    %cst = arith.constant dense<0.000000e+00> : vector<8x324xf32>
    %33 = tpu.matmul %31, %32, %cst {dimension_numbers = #tpu.dot_dimension_numbers<[1], [0], [0], [1], [0, 0, 1, 1], [], []>} : vector<8x72xbf16>, vector<72x324xbf16>, vector<8x324xf32> -> vector<8x324xf32>
    %c0_21 = arith.constant 0 : index
    %c0_22 = arith.constant 0 : index
    %34 = vector.load %arg4[%c0_21, %c0_22] : memref<8x1xf32, #tpu.memory_space<vmem>>, vector<8x1xf32>
    %35 = vector.broadcast %34 : vector<8x1xf32> to vector<8x324xf32>
    %36 = arith.addf %33, %35 : vector<8x324xf32>
    %cst_23 = arith.constant 0.000000e+00 : f32
    %37 = vector.broadcast %cst_23 : f32 to vector<8x324xf32>
    %38 = arith.maximumf %36, %37 : vector<8x324xf32>
    %c0_24 = arith.constant 0 : index
    %c0_25 = arith.constant 0 : index
    %39 = vector.load %arg6[%c0_24, %c0_25] : memref<1x324xf32, #tpu.memory_space<vmem>>, vector<1x324xf32>
    %40 = vector.broadcast %39 : vector<1x324xf32> to vector<8x324xf32>
    %41 = arith.mulf %38, %40 : vector<8x324xf32>
    %c0_26 = arith.constant 0 : index
    %c19_27 = arith.constant 19 : index
    %42 = vector.load %arg8[%c0_26, %c19_27] : memref<8x362xf32, #tpu.memory_space<vmem>>, vector<8x324xf32>
    tpu.vector_store %arg8[%c0_26, %c19_27], %41 {strides = array<i32>} : memref<8x362xf32, #tpu.memory_space<vmem>>, vector<8x324xf32>,
    %c0_28 = arith.constant 0 : index
    %c0_29 = arith.constant 0 : index
    %43 = vector.load %arg8[%c0_28, %c0_29] : memref<8x362xf32, #tpu.memory_space<vmem>>, vector<8x324xf32>
    %c0_30 = arith.constant 0 : index
    %c1_31 = arith.constant 1 : index
    %44 = vector.load %arg8[%c0_30, %c1_31] : memref<8x362xf32, #tpu.memory_space<vmem>>, vector<8x324xf32>
    %c0_32 = arith.constant 0 : index
    %c2_33 = arith.constant 2 : index
    %45 = vector.load %arg8[%c0_32, %c2_33] : memref<8x362xf32, #tpu.memory_space<vmem>>, vector<8x324xf32>
    %c0_34 = arith.constant 0 : index
    %c18_35 = arith.constant 18 : index
    %46 = vector.load %arg8[%c0_34, %c18_35] : memref<8x362xf32, #tpu.memory_space<vmem>>, vector<8x324xf32>
    %c0_36 = arith.constant 0 : index
    %c19_37 = arith.constant 19 : index
    %47 = vector.load %arg8[%c0_36, %c19_37] : memref<8x362xf32, #tpu.memory_space<vmem>>, vector<8x324xf32>
    %c0_38 = arith.constant 0 : index
    %c20_39 = arith.constant 20 : index
    %48 = vector.load %arg8[%c0_38, %c20_39] : memref<8x362xf32, #tpu.memory_space<vmem>>, vector<8x324xf32>
    %c0_40 = arith.constant 0 : index
    %c36_41 = arith.constant 36 : index
    %49 = vector.load %arg8[%c0_40, %c36_41] : memref<8x362xf32, #tpu.memory_space<vmem>>, vector<8x324xf32>
    %c0_42 = arith.constant 0 : index
    %c37_43 = arith.constant 37 : index
    %50 = vector.load %arg8[%c0_42, %c37_43] : memref<8x362xf32, #tpu.memory_space<vmem>>, vector<8x324xf32>
    %c0_44 = arith.constant 0 : index
    %c38_45 = arith.constant 38 : index
    %51 = vector.load %arg8[%c0_44, %c38_45] : memref<8x362xf32, #tpu.memory_space<vmem>>, vector<8x324xf32>
    %52 = tpu.concatenate %43, %44, %45, %46, %47, %48, %49, %50, %51 in 0 : vector<8x324xf32>, vector<8x324xf32>, vector<8x324xf32>, vector<8x324xf32>, vector<8x324xf32>, vector<8x324xf32>, vector<8x324xf32>, vector<8x324xf32>, vector<8x324xf32> -> vector<72x324xf32>
    %c0_46 = arith.constant 0 : index
    %c0_47 = arith.constant 0 : index
    %53 = vector.load %arg3[%c0_46, %c0_47] : memref<8x72xbf16, #tpu.memory_space<vmem>>, vector<8x72xbf16>
    %54 = arith.truncf %52 : vector<72x324xf32> to vector<72x324xbf16>
    %cst_48 = arith.constant dense<0.000000e+00> : vector<8x324xf32>
    %55 = tpu.matmul %53, %54, %cst_48 {dimension_numbers = #tpu.dot_dimension_numbers<[1], [0], [0], [1], [0, 0, 1, 1], [], []>} : vector<8x72xbf16>, vector<72x324xbf16>, vector<8x324xf32> -> vector<8x324xf32>
    %c0_49 = arith.constant 0 : index
    %c0_50 = arith.constant 0 : index
    %c19_51 = arith.constant 19 : index
    %56 = vector.load %arg1[%c0_49, %c0_50, %c19_51] : memref<1x8x362xbf16, #tpu.memory_space<vmem>>, vector<1x8x324xbf16>
    %57 = vector.shape_cast %56 : vector<1x8x324xbf16> to vector<8x324xbf16>
    %58 = arith.extf %57 : vector<8x324xbf16> to vector<8x324xf32>
    %c0_52 = arith.constant 0 : index
    %c0_53 = arith.constant 0 : index
    %59 = vector.load %arg5[%c0_52, %c0_53] : memref<8x1xf32, #tpu.memory_space<vmem>>, vector<8x1xf32>
    %60 = vector.broadcast %59 : vector<8x1xf32> to vector<8x324xf32>
    %61 = arith.addf %55, %60 : vector<8x324xf32>
    %62 = arith.addf %61, %58 : vector<8x324xf32>
    %cst_54 = arith.constant 0.000000e+00 : f32
    %63 = vector.broadcast %cst_54 : f32 to vector<8x324xf32>
    %64 = arith.maximumf %62, %63 : vector<8x324xf32>
    %c0_55 = arith.constant 0 : index
    %c0_56 = arith.constant 0 : index
    %c0_57 = arith.constant 0 : index
    %65 = vector.load %arg7[%c0_55, %c0_56, %c0_57] : memref<1x8x324xf32, #tpu.memory_space<vmem>>, vector<1x8x324xf32>
    %66 = vector.shape_cast %65 : vector<1x8x324xf32> to vector<8x324xf32>
    %67 = vector.shape_cast %64 : vector<8x324xf32> to vector<1x8x324xf32>
    tpu.vector_store %arg7[%c0_55, %c0_56, %c0_57], %67 {strides = array<i32>} : memref<1x8x324xf32, #tpu.memory_space<vmem>>, vector<1x8x324xf32>,
    return
  }
  func.func @transform_0(%arg0: i32) -> (i32, i32, i32) {
    %c0_i32 = arith.constant 0 : i32
    %c0_i32_0 = arith.constant 0 : i32
    %c0_i32_1 = arith.constant 0 : i32
    return %arg0, %c0_i32, %c0_i32_0 : i32, i32, i32
  }
  func.func @transform_1(%arg0: i32) -> (i32, i32) {
    %c0_i32 = arith.constant 0 : i32
    %c0_i32_0 = arith.constant 0 : i32
    %c0_i32_1 = arith.constant 0 : i32
    return %c0_i32, %c0_i32_0 : i32, i32
  }
  func.func @transform_2(%arg0: i32) -> (i32, i32) {
    %c0_i32 = arith.constant 0 : i32
    %c0_i32_0 = arith.constant 0 : i32
    %c0_i32_1 = arith.constant 0 : i32
    return %c0_i32, %c0_i32_0 : i32, i32
  }
  func.func @transform_3(%arg0: i32) -> (i32, i32) {
    %c0_i32 = arith.constant 0 : i32
    %c0_i32_0 = arith.constant 0 : i32
    %c0_i32_1 = arith.constant 0 : i32
    return %c0_i32, %c0_i32_0 : i32, i32
  }
  func.func @transform_4(%arg0: i32) -> (i32, i32) {
    %c0_i32 = arith.constant 0 : i32
    %c0_i32_0 = arith.constant 0 : i32
    %c0_i32_1 = arith.constant 0 : i32
    return %c0_i32, %c0_i32_0 : i32, i32
  }
  func.func @transform_5(%arg0: i32) -> (i32, i32) {
    %c0_i32 = arith.constant 0 : i32
    %c0_i32_0 = arith.constant 0 : i32
    %c0_i32_1 = arith.constant 0 : i32
    return %c0_i32, %c0_i32_0 : i32, i32
  }
  func.func @transform_6(%arg0: i32) -> (i32, i32, i32) {
    %c0_i32 = arith.constant 0 : i32
    %c0_i32_0 = arith.constant 0 : i32
    %c0_i32_1 = arith.constant 0 : i32
    return %arg0, %c0_i32, %c0_i32_0 : i32, i32, i32
  }
}

</mosaic_0001>

<llo_original>
// kernel: tpu_custom_call.1
$region0: #{tpu_custom_call.1}
  #allocation0 [shape = 'u32[]', space=smem, size = 0x4, offset = 0x4, fixed_abs, tag = 'smem constant byte address 0x4 - core index']
  #allocation1 [shape = 'u32[144,128]{1,0:T(1,128)}', space=vmem, size = 0x12000, scoped, tag = 'internal scratch']
  #allocation2 [shape = 'f32[8,362]{1,0:T(8,128)}', space=vmem, size = 0x3000, scoped, tag = 'scratch operand']
  %s0 = inlined_call_operand.hbm [shape: bf16[2,8,362], index: 0, kind: input, shape index: {}]
  %s1 = inlined_call_operand.vmem [shape: bf16[8,72], index: 1, kind: input, shape index: {}]
  %s2 = inlined_call_operand.vmem [shape: bf16[8,72], index: 2, kind: input, shape index: {}]
  %s3 = inlined_call_operand.vmem [shape: f32[8,1], index: 3, kind: input, shape index: {}]
  %s4 = inlined_call_operand.vmem [shape: f32[8,1], index: 4, kind: input, shape index: {}]
  %s5 = inlined_call_operand.vmem [shape: f32[1,324], index: 5, kind: input, shape index: {}]
  %s6 = inlined_call_operand.hbm [shape: f32[2,8,324], index: 6, kind: output, shape index: {}]
  %s7 = sld [smem:[#allocation0]]
  $region65: #{tpu_custom_call.1} parent=0
    _
  %s9 = ssub.s32 1, %s7
  %s10 = scalar_select 0, %s9, %s7
  $region1: #{tpu_custom_call.1} parent=0
    #allocation3 [shape = 'u8[12288]{0}', space=vmem, size = 0x3000, scoped, tag = 'input window, operand 0']
    #allocation4 [shape = 's32[2]{0}', space=sflag, size = 0x8, scoped, tag = 'scoped memory for tpu_custom_call.1']
    #allocation5 [shape = 's32[2]{0}', space=sflag, size = 0x8, scoped, tag = 'scoped memory for tpu_custom_call.1']
    #allocation6 [shape = 'u8[24576]{0}', space=vmem, size = 0x6000, scoped, tag = 'output window, operand 0']
    %11 = vsyncpa [#allocation4], 0
    %s12 = scalar_lea.sflag [#allocation4], 1
    %13 = vsyncpa %s12, 0
    %14 = vsyncpa [#allocation5], 0
    %s15 = scalar_lea.sflag [#allocation5], 1
    %16 = vsyncpa %s15, 0
    loop: start=0, step=1, limit=4
    $region2: #{tpu_custom_call.1} parent=1 // loop_pre_header
      _
    $region3: #{tpu_custom_call.1} parent=1 // loop_header
      %s18 = sphi 0, %s22
      %p19 = scmp.ge.s32.totalorder %s18, 4
      %s28 = sphi 0, %s30
      %s31 = sphi 0, %s28
      %s32 = sphi 0, %s31
      %s48 = sphi 0, %s32
      %s52 = sphi 0, %s52
      %s54 = sphi 0, %s52
      %s55 = sphi 0, %s54
      %s69 = sphi 0, %s55
      %s73 = sphi 0, %s73
      %s75 = sphi 0, %s73
      %s76 = sphi 0, %s75
      %s90 = sphi 0, %s76
      %s94 = sphi 0, %s94
      %s96 = sphi 0, %s94
      %s97 = sphi 0, %s96
      %s111 = sphi 0, %s97
      %s115 = sphi 0, %s115
      %s117 = sphi 0, %s115
      %s118 = sphi 0, %s117
      %s132 = sphi 0, %s118
      %s136 = sphi 0, %s136
      %s138 = sphi 0, %s136
      %s139 = sphi 0, %s138
      %s153 = sphi 0, %s139
      %s159 = sphi 0, %s161
      %s162 = sphi 0, %s159
      %s163 = sphi 0, %s162
      %s179 = sphi 0, %s163
    $region4: #{tpu_custom_call.1} parent=1 // loop_header_branch
      %21 = sbr.rel (%p19) target = $region8
    $region5: #{tpu_custom_call.1} parent=1 // loop_body
      %s23 = ssub.s32 %s18, 1
      %s24 = ssub.s32 %s18, 2
      %s25 = sadd.s32 %s18, 1
      %s26 = ssub.s32 %s18, %s25
      %p27 = scmp.eq.s32.totalorder %s26, 0
      %s29 = sadd.s32 %s28, 1
      %s30 = scalar_select %p27, %s28, %s29
      %p33 = pneg %p27
      %p34 = scmp.eq.s32.totalorder %s18, 1
      %p35 = por %p33, %p34
      %p36 = scmp.ne.s32.totalorder %s28, %s31
      %p37 = scmp.eq.s32.totalorder %s18, 0
      %p38 = por %p36, %p37
      %p39 = scmp.ne.s32.totalorder %s28, %s31
      %p40 = scmp.eq.s32.totalorder %s23, 1
      %p41 = por %p39, %p40
      %p42 = scmp.ne.s32.totalorder %s31, %s32
      %p43 = scmp.eq.s32.totalorder %s23, 0
      %p44 = por %p42, %p43
      %p45 = scmp.ne.s32.totalorder %s31, %s32
      %p46 = scmp.eq.s32.totalorder %s24, 1
      %p47 = por %p45, %p46
      %p49 = scmp.ne.s32.totalorder %s32, %s48
      %p50 = scmp.eq.s32.totalorder %s24, 0
      %p51 = por %p49, %p50
      %s53 = sadd.s32 %s52, 1
      %p56 = scmp.eq.s32.totalorder %s18, 1
      %p57 = scmp.ne.s32.totalorder %s52, %s54
      %p58 = scmp.eq.s32.totalorder %s18, 0
      %p59 = por %p57, %p58
      %p60 = scmp.ne.s32.totalorder %s52, %s54
      %p61 = scmp.eq.s32.totalorder %s23, 1
      %p62 = por %p60, %p61
      %p63 = scmp.ne.s32.totalorder %s54, %s55
      %p64 = scmp.eq.s32.totalorder %s23, 0
      %p65 = por %p63, %p64
      %p66 = scmp.ne.s32.totalorder %s54, %s55
      %p67 = scmp.eq.s32.totalorder %s24, 1
      %p68 = por %p66, %p67
      %p70 = scmp.ne.s32.totalorder %s55, %s69
      %p71 = scmp.eq.s32.totalorder %s24, 0
      %p72 = por %p70, %p71
      %s74 = sadd.s32 %s73, 1
      %p77 = scmp.eq.s32.totalorder %s18, 1
      %p78 = scmp.ne.s32.totalorder %s73, %s75
      %p79 = scmp.eq.s32.totalorder %s18, 0
      %p80 = por %p78, %p79
      %p81 = scmp.ne.s32.totalorder %s73, %s75
      %p82 = scmp.eq.s32.totalorder %s23, 1
      %p83 = por %p81, %p82
      %p84 = scmp.ne.s32.totalorder %s75, %s76
      %p85 = scmp.eq.s32.totalorder %s23, 0
      %p86 = por %p84, %p85
      %p87 = scmp.ne.s32.totalorder %s75, %s76
      %p88 = scmp.eq.s32.totalorder %s24, 1
      %p89 = por %p87, %p88
      %p91 = scmp.ne.s32.totalorder %s76, %s90
      %p92 = scmp.eq.s32.totalorder %s24, 0
      %p93 = por %p91, %p92
      %s95 = sadd.s32 %s94, 1
      %p98 = scmp.eq.s32.totalorder %s18, 1
      %p99 = scmp.ne.s32.totalorder %s94, %s96
      %p100 = scmp.eq.s32.totalorder %s18, 0
      %p101 = por %p99, %p100
      %p102 = scmp.ne.s32.totalorder %s94, %s96
      %p103 = scmp.eq.s32.totalorder %s23, 1
      %p104 = por %p102, %p103
      %p105 = scmp.ne.s32.totalorder %s96, %s97
      %p106 = scmp.eq.s32.totalorder %s23, 0
      %p107 = por %p105, %p106
      %p108 = scmp.ne.s32.totalorder %s96, %s97
      %p109 = scmp.eq.s32.totalorder %s24, 1
      %p110 = por %p108, %p109
      %p112 = scmp.ne.s32.totalorder %s97, %s111
      %p113 = scmp.eq.s32.totalorder %s24, 0
      %p114 = por %p112, %p113
      %s116 = sadd.s32 %s115, 1
      %p119 = scmp.eq.s32.totalorder %s18, 1
      %p120 = scmp.ne.s32.totalorder %s115, %s117
      %p121 = scmp.eq.s32.totalorder %s18, 0
      %p122 = por %p120, %p121
      %p123 = scmp.ne.s32.totalorder %s115, %s117
      %p124 = scmp.eq.s32.totalorder %s23, 1
      %p125 = por %p123, %p124
      %p126 = scmp.ne.s32.totalorder %s117, %s118
      %p127 = scmp.eq.s32.totalorder %s23, 0
      %p128 = por %p126, %p127
      %p129 = scmp.ne.s32.totalorder %s117, %s118
      %p130 = scmp.eq.s32.totalorder %s24, 1
      %p131 = por %p129, %p130
      %p133 = scmp.ne.s32.totalorder %s118, %s132
      %p134 = scmp.eq.s32.totalorder %s24, 0
      %p135 = por %p133, %p134
      %s137 = sadd.s32 %s136, 1
      %p140 = scmp.eq.s32.totalorder %s18, 1
      %p141 = scmp.ne.s32.totalorder %s136, %s138
      %p142 = scmp.eq.s32.totalorder %s18, 0
      %p143 = por %p141, %p142
      %p144 = scmp.ne.s32.totalorder %s136, %s138
      %p145 = scmp.eq.s32.totalorder %s23, 1
      %p146 = por %p144, %p145
      %p147 = scmp.ne.s32.totalorder %s138, %s139
      %p148 = scmp.eq.s32.totalorder %s23, 0
      %p149 = por %p147, %p148
      %p150 = scmp.ne.s32.totalorder %s138, %s139
      %p151 = scmp.eq.s32.totalorder %s24, 1
      %p152 = por %p150, %p151
      %p154 = scmp.ne.s32.totalorder %s139, %s153
      %p155 = scmp.eq.s32.totalorder %s24, 0
      %p156 = por %p154, %p155
      %s157 = ssub.s32 %s18, %s25
      %p158 = scmp.eq.s32.totalorder %s157, 0
      %s160 = sadd.s32 %s159, 1
      %s161 = scalar_select %p158, %s159, %s160
      %p164 = pneg %p158
      %p165 = scmp.eq.s32.totalorder %s18, 1
      %p166 = por %p164, %p165
      %p167 = scmp.ne.s32.totalorder %s159, %s162
      %p168 = scmp.eq.s32.totalorder %s18, 0
      %p169 = por %p167, %p168
      %p170 = scmp.ne.s32.totalorder %s159, %s162
      %p171 = scmp.eq.s32.totalorder %s23, 1
      %p172 = por %p170, %p171
      %p173 = scmp.ne.s32.totalorder %s162, %s163
      %p174 = scmp.eq.s32.totalorder %s23, 0
      %p175 = por %p173, %p174
      %p176 = scmp.ne.s32.totalorder %s162, %s163
      %p177 = scmp.eq.s32.totalorder %s24, 1
      %p178 = por %p176, %p177
      %p180 = scmp.ne.s32.totalorder %s163, %s179
      %p181 = scmp.eq.s32.totalorder %s24, 0
      %p182 = por %p180, %p181
      %p183 = scmp.le.s32.totalorder 1, %s18
      %p184 = scmp.lt.s32.totalorder %s18, 3
      %p185 = pnand %p183, %p184
      %p186 = pneg %p185
      // Predicated region
      $region9: #{tpu_custom_call.1} parent=5 // pred_check
        _
      $region10: #{tpu_custom_call.1} parent=5 // pred_check_branch
        %188 = sbr.rel (%p185) target = $region12
      $region11: #{tpu_custom_call.1} parent=5 // pred_region
        %s189 = ssub.s32 %s18, 1
        // Predicated region
        $region13: #{tpu_custom_call.1} parent=11 // pred_check
          %p190 = pneg %p65
        $region14: #{tpu_custom_call.1} parent=11 // pred_check_branch
          %192 = sbr.rel (%p190) target = $region16
        $region15: #{tpu_custom_call.1} parent=11 // pred_region
          _
        $region16: #{tpu_custom_call.1} parent=11 // pred_fallthru
          _
        // Predicated region
        $region17: #{tpu_custom_call.1} parent=11 // pred_check
          %p193 = pneg %p86
        $region18: #{tpu_custom_call.1} parent=11 // pred_check_branch
          %195 = sbr.rel (%p193) target = $region20
        $region19: #{tpu_custom_call.1} parent=11 // pred_region
          _
        $region20: #{tpu_custom_call.1} parent=11 // pred_fallthru
          _
        // Predicated region
        $region21: #{tpu_custom_call.1} parent=11 // pred_check
          %p196 = pneg %p107
        $region22: #{tpu_custom_call.1} parent=11 // pred_check_branch
          %198 = sbr.rel (%p196) target = $region24
        $region23: #{tpu_custom_call.1} parent=11 // pred_region
          _
        $region24: #{tpu_custom_call.1} parent=11 // pred_fallthru
          _
        // Predicated region
        $region25: #{tpu_custom_call.1} parent=11 // pred_check
          %p199 = pneg %p128
        $region26: #{tpu_custom_call.1} parent=11 // pred_check_branch
          %201 = sbr.rel (%p199) target = $region28
        $region27: #{tpu_custom_call.1} parent=11 // pred_region
          _
        $region28: #{tpu_custom_call.1} parent=11 // pred_fallthru
          _
        // Predicated region
        $region29: #{tpu_custom_call.1} parent=11 // pred_check
          %p202 = pneg %p149
        $region30: #{tpu_custom_call.1} parent=11 // pred_check_branch
          %204 = sbr.rel (%p202) target = $region32
        $region31: #{tpu_custom_call.1} parent=11 // pred_region
          _
        $region32: #{tpu_custom_call.1} parent=11 // pred_fallthru
          _
      $region12: #{tpu_custom_call.1} parent=5 // pred_fallthru
        _
      %p205 = scmp.lt.s32.totalorder %s18, 2
      // Predicated region
      $region33: #{tpu_custom_call.1} parent=5 // pred_check
        %p206 = pneg %p205
      $region34: #{tpu_custom_call.1} parent=5 // pred_check_branch
        %208 = sbr.rel (%p206) target = $region36
      $region35: #{tpu_custom_call.1} parent=5 // pred_region
        // Predicated region
        $region37: #{tpu_custom_call.1} parent=35 // pred_check
          %p209 = pneg %p38
        $region38: #{tpu_custom_call.1} parent=35 // pred_check_branch
          %211 = sbr.rel (%p209) target = $region40
        $region39: #{tpu_custom_call.1} parent=35 // pred_region
          %s212 = sand.u32 %s28, 1
          %s213 = scalar_lea.sflag [#allocation4], %s212
          %s214 = sand.u32 %s28, 1
          %s215 = smul.addr %s214, 12
          %s216 = scalar_lea.vmem [#allocation3], %s215
          %s218 = ssub.s32 192, 192
          %219 = vsyncadd %s213, %s218
          %s220 = smul.addr %s18, 3
          %s221 = smul.addr %s220, 64
          %s222 = scalar_lea.hbm %s0, %s221
          %s224 = sshll.u32 %s216, 4
          %s225 = int_to_ptr.vmem [resolvable:$true] %s224
          %227 = dma.hbm_to_vmem [thread:$0]  %s222, 192, %s225, %s213
        $region40: #{tpu_custom_call.1} parent=35 // pred_fallthru
          _
      $region36: #{tpu_custom_call.1} parent=5 // pred_fallthru
        _
      %p228 = scmp.le.s32.totalorder 1, %s18
      %p229 = scmp.lt.s32.totalorder %s18, 3
      %p230 = pnand %p228, %p229
      %p231 = pneg %p230
      // Predicated region
      $region41: #{tpu_custom_call.1} parent=5 // pred_check
        _
      $region42: #{tpu_custom_call.1} parent=5 // pred_check_branch
        %233 = sbr.rel (%p230) target = $region44
      $region43: #{tpu_custom_call.1} parent=5 // pred_region
        %s234 = ssub.s32 %s18, 1
        %s235 = sand.u32 %s31, 1
        %s236 = scalar_lea.sflag [#allocation4], %s235
        %s237 = sand.u32 %s31, 1
        %s238 = smul.addr %s237, 12
        %s239 = scalar_lea.vmem [#allocation3], %s238
        // Predicated region
        $region45: #{tpu_custom_call.1} parent=43 // pred_check
          %p240 = pneg %p44
        $region46: #{tpu_custom_call.1} parent=43 // pred_check_branch
          %242 = sbr.rel (%p240) target = $region48
        $region47: #{tpu_custom_call.1} parent=43 // pred_region
          %243 = dma.done %s236, 192
        $region48: #{tpu_custom_call.1} parent=43 // pred_fallthru
          _
        %s244 = sand.u32 %s31, 1
        %s245 = scalar_lea.sflag [#allocation4], %s244
        %s246 = sand.u32 %s31, 1
        %s247 = smul.addr %s246, 12
        %s248 = scalar_lea.vmem [#allocation3], %s247
        %p249 = pneg %p44
        %p250 = pneg %p41
        %p251 = pneg %p65
        %p252 = pneg %p62
        %p253 = pneg %p86
        %p254 = pneg %p83
        %p255 = pneg %p107
        %p256 = pneg %p104
        %p257 = pneg %p128
        %p258 = pneg %p125
        %p259 = pneg %p149
        %p260 = pneg %p146
        %p261 = pneg %p175
        %p262 = pneg %p172
        %s263 = sand.u32 %s162, 1
        %s264 = scalar_lea.sflag [#allocation5], %s263
        %s265 = sand.u32 %s162, 1
        %s266 = smul.addr %s265, 24
        %s267 = scalar_lea.vmem [#allocation6], %s266
        %p269 = scmp.eq.s32.totalorder %s23, 0
        // Predicated region
        $region49: #{tpu_custom_call.1} parent=43 // pred_check
          %p270 = pneg %p269
        $region50: #{tpu_custom_call.1} parent=43 // pred_check_branch
          %272 = sbr.rel (%p270) target = $region52
        $region51: #{tpu_custom_call.1} parent=43 // pred_region
          %vm273 = vcmask 154624
          %274 = vst.msk [vmem:[#allocation2] sm:$0xff] %vm273, 0.0
          %vm275 = vcmask 868024
          %276 = vst.msk [vmem:[#allocation2 + $0x10] sm:$0xff] %vm275, 0.0
        $region52: #{tpu_custom_call.1} parent=43 // pred_fallthru
          _
        %v277 = vld [vmem:[%s239] sm:$0xff]
        %v278 = vld [vmem:[%s239 + $0x8] sm:$0xf]
        %v279 = vunpack.c.l.bf16 %v277
        %v280 = vunpack.c.h.bf16 %v277
        %v281 = vunpack.c.l.bf16 %v278
        %285 = vrot.lane.b32.xlu0 %v279, 127
        %v286 = vpop.permute.xlu0 %285
        %287 = vrot.lane.b32.xlu0 %v280, 127
        %v288 = vpop.permute.xlu0 %287
        %289 = vrot.lane.b32.xlu0 %v281, 127
        %v290 = vpop.permute.xlu0 %289
        %vm291 = vcmask 1039360
        %v292 = vsel %vm291, %v286, %v288
        %v293 = vsel %vm291, %v288, %v290
        %297 = vrot.lane.b32.xlu0 %v279, 126
        %v298 = vpop.permute.xlu0 %297
        %299 = vrot.lane.b32.xlu0 %v280, 126
        %v300 = vpop.permute.xlu0 %299
        %301 = vrot.lane.b32.xlu0 %v281, 126
        %v302 = vpop.permute.xlu0 %301
        %vm303 = vcmask 1031168
        %v304 = vsel %vm303, %v298, %v300
        %v305 = vsel %vm303, %v300, %v302
        %309 = vrot.lane.b32.xlu0 %v279, 110
        %v310 = vpop.permute.xlu0 %309
        %311 = vrot.lane.b32.xlu0 %v280, 110
        %v312 = vpop.permute.xlu0 %311
        %313 = vrot.lane.b32.xlu0 %v281, 110
        %v314 = vpop.permute.xlu0 %313
        %vm315 = vcmask 900096
        %v316 = vsel %vm315, %v310, %v312
        %v317 = vsel %vm315, %v312, %v314
        %321 = vrot.lane.b32.xlu0 %v279, 109
        %v322 = vpop.permute.xlu0 %321
        %323 = vrot.lane.b32.xlu0 %v280, 109
        %v324 = vpop.permute.xlu0 %323
        %325 = vrot.lane.b32.xlu0 %v281, 109
        %v326 = vpop.permute.xlu0 %325
        %vm327 = vcmask 891904
        %v328 = vsel %vm327, %v322, %v324
        %v329 = vsel %vm327, %v324, %v326
        %333 = vrot.lane.b32.xlu0 %v279, 108
        %v334 = vpop.permute.xlu0 %333
        %335 = vrot.lane.b32.xlu0 %v280, 108
        %v336 = vpop.permute.xlu0 %335
        %337 = vrot.lane.b32.xlu0 %v281, 108
        %v338 = vpop.permute.xlu0 %337
        %vm339 = vcmask 883712
        %v340 = vsel %vm339, %v334, %v336
        %v341 = vsel %vm339, %v336, %v338
        %345 = vrot.lane.b32.xlu0 %v279, 92
        %v346 = vpop.permute.xlu0 %345
        %347 = vrot.lane.b32.xlu0 %v280, 92
        %v348 = vpop.permute.xlu0 %347
        %349 = vrot.lane.b32.xlu0 %v281, 92
        %v350 = vpop.permute.xlu0 %349
        %vm351 = vcmask 752640
        %v352 = vsel %vm351, %v346, %v348
        %v353 = vsel %vm351, %v348, %v350
        %357 = vrot.lane.b32.xlu0 %v279, 91
        %v358 = vpop.permute.xlu0 %357
        %359 = vrot.lane.b32.xlu0 %v280, 91
        %v360 = vpop.permute.xlu0 %359
        %361 = vrot.lane.b32.xlu0 %v281, 91
        %v362 = vpop.permute.xlu0 %361
        %vm363 = vcmask 744448
        %v364 = vsel %vm363, %v358, %v360
        %v365 = vsel %vm363, %v360, %v362
        %369 = vrot.lane.b32.xlu0 %v279, 90
        %v370 = vpop.permute.xlu0 %369
        %371 = vrot.lane.b32.xlu0 %v280, 90
        %v372 = vpop.permute.xlu0 %371
        %373 = vrot.lane.b32.xlu0 %v281, 90
        %v374 = vpop.permute.xlu0 %373
        %vm375 = vcmask 736256
        %v376 = vsel %vm375, %v370, %v372
        %v377 = vsel %vm375, %v372, %v374
        %v381 = vld [vmem:[%s1] sm:$0xf]
        %v382 = vpack.c.bf16 %v292, %v279
        %v383 = vpack.c.bf16 %v293, %v280
        %v384 = vpack.c.bf16 %v290, %v281
        %v385 = vpack.c.bf16 %v316, %v304
        %v386 = vpack.c.bf16 %v317, %v305
        %v387 = vpack.c.bf16 %v314, %v302
        %v388 = vpack.c.bf16 %v340, %v328
        %v389 = vpack.c.bf16 %v341, %v329
        %v390 = vpack.c.bf16 %v338, %v326
        %v391 = vpack.c.bf16 %v364, %v352
        %v392 = vpack.c.bf16 %v365, %v353
        %v393 = vpack.c.bf16 %v362, %v350
        %v394 = vpack.c.bf16 %v376, %v376
        %v395 = vpack.c.bf16 %v377, %v377
        %v396 = vpack.c.bf16 %v374, %v374
        %v397 = vld [vmem:[%s3] sm:$0xff]
        %399 = vset.pattern.permute.xlu0 0
        %400 = vperm.xlu0 %399, %v397
        %v401 = vpop.permute.xlu0 %400
        %vm403 = vcmask 588800
        %v405 = vsel %vm403, %v381, 0
        %vm407 = vcmask 1043456
        %v409 = vsel %vm407, %v394, 0
        %v412 = vsel %vm407, %v395, 0
        %v415 = vsel %vm407, %v396, 0
        %417 = vmatprep.subr.bf16.mxu0 %v383
        %418 = vmatpush1.bf16.msra.mxu0 %v382
        %419 = vmatprep.subr.bf16.mxu0 %v386
        %420 = vmatpush1.bf16.msra.mxu0 %v385
        %421 = vmatprep.subr.bf16.mxu0 %v389
        %422 = vmatpush1.bf16.msra.mxu0 %v388
        %423 = vmatprep.subr.bf16.mxu0 %v392
        %424 = vmatpush1.bf16.msra.mxu0 %v391
        %425 = vmatprep.subr.bf16.mxu0 %v412
        %426 = vmatpush1.bf16.msra.mxu0 %v409
        %427 = vmatprep.subr.bf16.mxu0 0
        %428 = vmatpush1.bf16.msra.mxu0 0
        %429 = vmatprep.subr.bf16.mxu0 0
        %430 = vmatpush1.bf16.msra.mxu0 0
        %431 = vmatprep.subr.bf16.mxu0 0
        %432 = vmatpush1.bf16.msra.mxu0 0
        %433 = vmatprep.subr.bf16.mxu0 0
        %434 = vmatpush1.bf16.msra.mxu0 0
        %435 = vmatprep.subr.bf16.mxu0 0
        %436 = vmatpush1.bf16.msra.mxu0 0
        %437 = vmatprep.subr.bf16.mxu0 0
        %438 = vmatpush1.bf16.msra.mxu0 0
        %439 = vmatprep.subr.bf16.mxu0 0
        %440 = vmatpush1.bf16.msra.mxu0 0
        %441 = vmatprep.subr.bf16.mxu0 0
        %442 = vmatpush1.bf16.msra.mxu0 0
        %443 = vmatprep.subr.bf16.mxu0 0
        %444 = vmatpush1.bf16.msra.mxu0 0
        %445 = vmatprep.subr.bf16.mxu0 0
        %446 = vmatpush1.bf16.msra.mxu0 0
        %447 = vmatprep.subr.bf16.mxu0 0
        %448 = vmatpush1.bf16.msra.mxu0 0
        %449 = vmatprep.mubr.bf16.mxu0 0
        %450 = vmatmul.mubr.bf16.gmra.mrb[0].mxu0 %v405
        %v451 = vpop.f32.mrb[0].mxu0
        %v452 = vadd.f32 %v401, %v451
        %v453 = vpop.f32.mrb[0].mxu0
        %v454 = vadd.f32 %v401, %v453
        %v455 = vpop.f32.mrb[0].mxu0
        %v456 = vpop.f32.mrb[0].mxu0
        %457 = vdwg.mxu0
        %458 = vmatprep.subr.bf16.mxu0 0
        %459 = vmatpush1.bf16.msra.mxu0 %v384
        %460 = vmatprep.subr.bf16.mxu0 0
        %461 = vmatpush1.bf16.msra.mxu0 %v387
        %462 = vmatprep.subr.bf16.mxu0 0
        %463 = vmatpush1.bf16.msra.mxu0 %v390
        %464 = vmatprep.subr.bf16.mxu0 0
        %465 = vmatpush1.bf16.msra.mxu0 %v393
        %466 = vmatprep.subr.bf16.mxu0 0
        %467 = vmatpush1.bf16.msra.mxu0 %v415
        %468 = vmatprep.subr.bf16.mxu0 0
        %469 = vmatpush1.bf16.msra.mxu0 0
        %470 = vmatprep.subr.bf16.mxu0 0
        %471 = vmatpush1.bf16.msra.mxu0 0
        %472 = vmatprep.subr.bf16.mxu0 0
        %473 = vmatpush1.bf16.msra.mxu0 0
        %474 = vmatprep.subr.bf16.mxu0 0
        %475 = vmatpush1.bf16.msra.mxu0 0
        %476 = vmatprep.subr.bf16.mxu0 0
        %477 = vmatpush1.bf16.msra.mxu0 0
        %478 = vmatprep.subr.bf16.mxu0 0
        %479 = vmatpush1.bf16.msra.mxu0 0
        %480 = vmatprep.subr.bf16.mxu0 0
        %481 = vmatpush1.bf16.msra.mxu0 0
        %482 = vmatprep.subr.bf16.mxu0 0
        %483 = vmatpush1.bf16.msra.mxu0 0
        %484 = vmatprep.subr.bf16.mxu0 0
        %485 = vmatpush1.bf16.msra.mxu0 0
        %486 = vmatprep.subr.bf16.mxu0 0
        %487 = vmatpush1.bf16.msra.mxu0 0
        %488 = vmatprep.subr.bf16.mxu0 0
        %489 = vmatpush1.bf16.msra.mxu0 0
        %490 = vmatprep.mubr.bf16.mxu0 0
        %491 = vmatmul.mubr.bf16.gmra.mrb[0].mxu0 %v405
        %v492 = vpop.f32.mrb[0].mxu0
        %v493 = vadd.f32 %v401, %v492
        %v494 = vpop.f32.mrb[0].mxu0
        %v495 = vpop.f32.mrb[0].mxu0
        %v496 = vpop.f32.mrb[0].mxu0
        %497 = vdwg.mxu0
        %v498 = vmax.f32 %v452, 0.0
        %v499 = vmax.f32 %v454, 0.0
        %v500 = vmax.f32 %v493, 0.0
        %v501 = vld [vmem:[%s5] sm:$0x7]
        %v503 = vlaneseq
        %v504 = vshrl.u32 %v503, 7
        %v505 = vsub.s32 0, %v504
        %v506 = vrot.slane %v501, %v505
        %v507 = vlaneseq
        %v508 = vshrl.u32 %v507, 7
        %v509 = vsub.s32 1, %v508
        %v510 = vrot.slane %v501, %v509
        %v511 = vlaneseq
        %v512 = vshrl.u32 %v511, 7
        %v513 = vsub.s32 2, %v512
        %v514 = vrot.slane %v501, %v513
        %v518 = vmul.f32 %v498, %v506
        %v519 = vmul.f32 %v499, %v510
        %v520 = vmul.f32 %v500, %v514
        %524 = vrot.lane.b32.xlu0 %v518, 19
        %v525 = vpop.permute.xlu0 %524
        %526 = vrot.lane.b32.xlu0 %v519, 19
        %v527 = vpop.permute.xlu0 %526
        %528 = vrot.lane.b32.xlu0 %v520, 19
        %v529 = vpop.permute.xlu0 %528
        %vm530 = vcmask 154624
        %v531 = vsel %vm530, %v525, %v527
        %v532 = vsel %vm530, %v527, %v529
        %vm536 = vcmask 1047704
        %537 = vst.msk [vmem:[#allocation2] sm:$0xff] %vm536, %v525
        %538 = vst [vmem:[#allocation2 + $0x8] sm:$0xff] %v531
        %vm539 = vcmask 711680
        %540 = vst.msk [vmem:[#allocation2 + $0x10] sm:$0xff] %vm539, %v532
        %v541 = vld [vmem:[#allocation2] sm:$0xff]
        %v542 = vld [vmem:[#allocation2 + $0x8] sm:$0xff]
        %v543 = vld [vmem:[#allocation2 + $0x10] sm:$0xff]
        %547 = vrot.lane.b32.xlu0 %v541, 127
        %v548 = vpop.permute.xlu0 %547
        %549 = vrot.lane.b32.xlu0 %v542, 127
        %v550 = vpop.permute.xlu0 %549
        %551 = vrot.lane.b32.xlu0 %v543, 127
        %v552 = vpop.permute.xlu0 %551
        %v553 = vsel %vm291, %v548, %v550
        %v554 = vsel %vm291, %v550, %v552
        %558 = vrot.lane.b32.xlu0 %v541, 126
        %v559 = vpop.permute.xlu0 %558
        %560 = vrot.lane.b32.xlu0 %v542, 126
        %v561 = vpop.permute.xlu0 %560
        %562 = vrot.lane.b32.xlu0 %v543, 126
        %v563 = vpop.permute.xlu0 %562
        %v564 = vsel %vm303, %v559, %v561
        %v565 = vsel %vm303, %v561, %v563
        %569 = vrot.lane.b32.xlu0 %v541, 110
        %v570 = vpop.permute.xlu0 %569
        %571 = vrot.lane.b32.xlu0 %v542, 110
        %v572 = vpop.permute.xlu0 %571
        %573 = vrot.lane.b32.xlu0 %v543, 110
        %v574 = vpop.permute.xlu0 %573
        %v575 = vsel %vm315, %v570, %v572
        %v576 = vsel %vm315, %v572, %v574
        %580 = vrot.lane.b32.xlu0 %v541, 109
        %v581 = vpop.permute.xlu0 %580
        %582 = vrot.lane.b32.xlu0 %v542, 109
        %v583 = vpop.permute.xlu0 %582
        %584 = vrot.lane.b32.xlu0 %v543, 109
        %v585 = vpop.permute.xlu0 %584
        %v586 = vsel %vm327, %v581, %v583
        %v587 = vsel %vm327, %v583, %v585
        %591 = vrot.lane.b32.xlu0 %v541, 108
        %v592 = vpop.permute.xlu0 %591
        %593 = vrot.lane.b32.xlu0 %v542, 108
        %v594 = vpop.permute.xlu0 %593
        %595 = vrot.lane.b32.xlu0 %v543, 108
        %v596 = vpop.permute.xlu0 %595
        %v597 = vsel %vm339, %v592, %v594
        %v598 = vsel %vm339, %v594, %v596
        %602 = vrot.lane.b32.xlu0 %v541, 92
        %v603 = vpop.permute.xlu0 %602
        %604 = vrot.lane.b32.xlu0 %v542, 92
        %v605 = vpop.permute.xlu0 %604
        %606 = vrot.lane.b32.xlu0 %v543, 92
        %v607 = vpop.permute.xlu0 %606
        %v608 = vsel %vm351, %v603, %v605
        %v609 = vsel %vm351, %v605, %v607
        %613 = vrot.lane.b32.xlu0 %v541, 91
        %v614 = vpop.permute.xlu0 %613
        %615 = vrot.lane.b32.xlu0 %v542, 91
        %v616 = vpop.permute.xlu0 %615
        %617 = vrot.lane.b32.xlu0 %v543, 91
        %v618 = vpop.permute.xlu0 %617
        %v619 = vsel %vm363, %v614, %v616
        %v620 = vsel %vm363, %v616, %v618
        %624 = vrot.lane.b32.xlu0 %v541, 90
        %v625 = vpop.permute.xlu0 %624
        %626 = vrot.lane.b32.xlu0 %v542, 90
        %v627 = vpop.permute.xlu0 %626
        %628 = vrot.lane.b32.xlu0 %v543, 90
        %v629 = vpop.permute.xlu0 %628
        %v630 = vsel %vm375, %v625, %v627
        %v631 = vsel %vm375, %v627, %v629
        %v635 = vld [vmem:[%s2] sm:$0xf]
        %v636 = vpack.c.bf16 %v553, %v541
        %v637 = vpack.c.bf16 %v554, %v542
        %v638 = vpack.c.bf16 %v552, %v543
        %v639 = vpack.c.bf16 %v575, %v564
        %v640 = vpack.c.bf16 %v576, %v565
        %v641 = vpack.c.bf16 %v574, %v563
        %v642 = vpack.c.bf16 %v597, %v586
        %v643 = vpack.c.bf16 %v598, %v587
        %v644 = vpack.c.bf16 %v596, %v585
        %v645 = vpack.c.bf16 %v619, %v608
        %v646 = vpack.c.bf16 %v620, %v609
        %v647 = vpack.c.bf16 %v618, %v607
        %v648 = vpack.c.bf16 %v630, %v630
        %v649 = vpack.c.bf16 %v631, %v631
        %v650 = vpack.c.bf16 %v629, %v629
        %v651 = vld [vmem:[%s239] sm:$0xff]
        %v652 = vld [vmem:[%s239 + $0x8] sm:$0xf]
        %v653 = vunpack.c.l.bf16 %v651
        %v654 = vunpack.c.h.bf16 %v651
        %v655 = vunpack.c.l.bf16 %v652
        %v656 = vld [vmem:[%s4] sm:$0xff]
        %658 = vset.pattern.permute.xlu0 0
        %659 = vperm.xlu0 %658, %v656
        %v660 = vpop.permute.xlu0 %659
        %v663 = vsel %vm403, %v635, 0
        %v666 = vsel %vm407, %v648, 0
        %v669 = vsel %vm407, %v649, 0
        %v672 = vsel %vm407, %v650, 0
        %674 = vmatprep.subr.bf16.mxu0 %v637
        %675 = vmatpush1.bf16.msra.mxu0 %v636
        %676 = vmatprep.subr.bf16.mxu0 %v640
        %677 = vmatpush1.bf16.msra.mxu0 %v639
        %678 = vmatprep.subr.bf16.mxu0 %v643
        %679 = vmatpush1.bf16.msra.mxu0 %v642
        %680 = vmatprep.subr.bf16.mxu0 %v646
        %681 = vmatpush1.bf16.msra.mxu0 %v645
        %682 = vmatprep.subr.bf16.mxu0 %v669
        %683 = vmatpush1.bf16.msra.mxu0 %v666
        %684 = vmatprep.subr.bf16.mxu0 0
        %685 = vmatpush1.bf16.msra.mxu0 0
        %686 = vmatprep.subr.bf16.mxu0 0
        %687 = vmatpush1.bf16.msra.mxu0 0
        %688 = vmatprep.subr.bf16.mxu0 0
        %689 = vmatpush1.bf16.msra.mxu0 0
        %690 = vmatprep.subr.bf16.mxu0 0
        %691 = vmatpush1.bf16.msra.mxu0 0
        %692 = vmatprep.subr.bf16.mxu0 0
        %693 = vmatpush1.bf16.msra.mxu0 0
        %694 = vmatprep.subr.bf16.mxu0 0
        %695 = vmatpush1.bf16.msra.mxu0 0
        %696 = vmatprep.subr.bf16.mxu0 0
        %697 = vmatpush1.bf16.msra.mxu0 0
        %698 = vmatprep.subr.bf16.mxu0 0
        %699 = vmatpush1.bf16.msra.mxu0 0
        %700 = vmatprep.subr.bf16.mxu0 0
        %701 = vmatpush1.bf16.msra.mxu0 0
        %702 = vmatprep.subr.bf16.mxu0 0
        %703 = vmatpush1.bf16.msra.mxu0 0
        %704 = vmatprep.subr.bf16.mxu0 0
        %705 = vmatpush1.bf16.msra.mxu0 0
        %706 = vmatprep.mubr.bf16.mxu0 0
        %707 = vmatmul.mubr.bf16.gmra.mrb[0].mxu0 %v663
        %v708 = vpop.f32.mrb[0].mxu0
        %v709 = vadd.f32 %v660, %v708
        %v710 = vpop.f32.mrb[0].mxu0
        %v711 = vadd.f32 %v660, %v710
        %v712 = vpop.f32.mrb[0].mxu0
        %v713 = vpop.f32.mrb[0].mxu0
        %714 = vdwg.mxu0
        %715 = vmatprep.subr.bf16.mxu0 0
        %716 = vmatpush1.bf16.msra.mxu0 %v638
        %717 = vmatprep.subr.bf16.mxu0 0
        %718 = vmatpush1.bf16.msra.mxu0 %v641
        %719 = vmatprep.subr.bf16.mxu0 0
        %720 = vmatpush1.bf16.msra.mxu0 %v644
        %721 = vmatprep.subr.bf16.mxu0 0
        %722 = vmatpush1.bf16.msra.mxu0 %v647
        %723 = vmatprep.subr.bf16.mxu0 0
        %724 = vmatpush1.bf16.msra.mxu0 %v672
        %725 = vmatprep.subr.bf16.mxu0 0
        %726 = vmatpush1.bf16.msra.mxu0 0
        %727 = vmatprep.subr.bf16.mxu0 0
        %728 = vmatpush1.bf16.msra.mxu0 0
        %729 = vmatprep.subr.bf16.mxu0 0
        %730 = vmatpush1.bf16.msra.mxu0 0
        %731 = vmatprep.subr.bf16.mxu0 0
        %732 = vmatpush1.bf16.msra.mxu0 0
        %733 = vmatprep.subr.bf16.mxu0 0
        %734 = vmatpush1.bf16.msra.mxu0 0
        %735 = vmatprep.subr.bf16.mxu0 0
        %736 = vmatpush1.bf16.msra.mxu0 0
        %737 = vmatprep.subr.bf16.mxu0 0
        %738 = vmatpush1.bf16.msra.mxu0 0
        %739 = vmatprep.subr.bf16.mxu0 0
        %740 = vmatpush1.bf16.msra.mxu0 0
        %741 = vmatprep.subr.bf16.mxu0 0
        %742 = vmatpush1.bf16.msra.mxu0 0
        %743 = vmatprep.subr.bf16.mxu0 0
        %744 = vmatpush1.bf16.msra.mxu0 0
        %745 = vmatprep.subr.bf16.mxu0 0
        %746 = vmatpush1.bf16.msra.mxu0 0
        %747 = vmatprep.mubr.bf16.mxu0 0
        %748 = vmatmul.mubr.bf16.gmra.mrb[0].mxu0 %v663
        %v749 = vpop.f32.mrb[0].mxu0
        %v750 = vadd.f32 %v660, %v749
        %v751 = vpop.f32.mrb[0].mxu0
        %v752 = vpop.f32.mrb[0].mxu0
        %v753 = vpop.f32.mrb[0].mxu0
        %754 = vdwg.mxu0
        %758 = vrot.lane.b32.xlu0 %v653, 109
        %v759 = vpop.permute.xlu0 %758
        %760 = vrot.lane.b32.xlu0 %v654, 109
        %v761 = vpop.permute.xlu0 %760
        %762 = vrot.lane.b32.xlu0 %v655, 109
        %v763 = vpop.permute.xlu0 %762
        %v764 = vsel %vm327, %v759, %v761
        %v765 = vsel %vm327, %v761, %v763
        %v769 = vadd.f32 %v709, %v764
        %v770 = vadd.f32 %v711, %v765
        %v771 = vadd.f32 %v750, %v763
        %v772 = vmax.f32 %v769, 0.0
        %v773 = vmax.f32 %v770, 0.0
        %v774 = vmax.f32 %v771, 0.0
        %775 = vst [vmem:[%s267] sm:$0xff] %v772
        %776 = vst [vmem:[%s267 + $0x8] sm:$0xff] %v773
        %vm777 = vcmask 556032
        %778 = vst.msk [vmem:[%s267 + $0x10] sm:$0xff] %vm777, %v774
        %s779 = sand.u32 %s162, 1
        %s780 = scalar_lea.sflag [#allocation5], %s779
        %s781 = sand.u32 %s162, 1
        %s782 = smul.addr %s781, 24
        %s783 = scalar_lea.vmem [#allocation6], %s782
        // Predicated region
        $region53: #{tpu_custom_call.1} parent=43 // pred_check
          %p784 = pneg %p172
        $region54: #{tpu_custom_call.1} parent=43 // pred_check_branch
          %786 = sbr.rel (%p784) target = $region56
        $region55: #{tpu_custom_call.1} parent=43 // pred_region
          %s788 = ssub.s32 384, 384
          %789 = vsyncadd %s780, %s788
          %s790 = smul.addr %s23, 3
          %s791 = smul.addr %s790, 128
          %s792 = scalar_lea.hbm %s6, %s791
          %s794 = sshll.u32 %s783, 4
          %s795 = int_to_ptr.vmem [resolvable:$true] %s794
          %797 = dma.vmem_to_hbm [thread:$0]  %s795, 384, %s792, %s780
        $region56: #{tpu_custom_call.1} parent=43 // pred_fallthru
          _
      $region44: #{tpu_custom_call.1} parent=5 // pred_fallthru
        _
      %p798 = scmp.le.s32.totalorder 2, %s18
      // Predicated region
      $region57: #{tpu_custom_call.1} parent=5 // pred_check
        %p799 = pneg %p798
      $region58: #{tpu_custom_call.1} parent=5 // pred_check_branch
        %801 = sbr.rel (%p799) target = $region60
      $region59: #{tpu_custom_call.1} parent=5 // pred_region
        %s802 = ssub.s32 %s18, 2
        // Predicated region
        $region61: #{tpu_custom_call.1} parent=59 // pred_check
          %p803 = pneg %p178
        $region62: #{tpu_custom_call.1} parent=59 // pred_check_branch
          %805 = sbr.rel (%p803) target = $region64
        $region63: #{tpu_custom_call.1} parent=59 // pred_region
          %s806 = sand.u32 %s163, 1
          %s807 = scalar_lea.sflag [#allocation5], %s806
          %s808 = sand.u32 %s163, 1
          %s809 = smul.addr %s808, 24
          %s810 = scalar_lea.vmem [#allocation6], %s809
          %811 = dma.done %s807, 384
        $region64: #{tpu_custom_call.1} parent=59 // pred_fallthru
          _
      $region60: #{tpu_custom_call.1} parent=5 // pred_fallthru
        _
    $region6: #{tpu_custom_call.1} parent=1 // loop_footer
      %s22 = sadd.s32 1, %s18
    $region7: #{tpu_custom_call.1} parent=1 // loop_footer_branch
      %17 = sbr.rel target = $region3
    $region8: #{tpu_custom_call.1} parent=1 // loop_exit
      _
    %812 = vsyncpa [#allocation4], 1
    %s813 = scalar_lea.sflag [#allocation4], 1
    %814 = vsyncpa %s813, 1
    %815 = vsyncpa [#allocation5], 1
    %s816 = scalar_lea.sflag [#allocation5], 1
    %817 = vsyncpa %s816, 1

</llo_original>
